<compile_context>
chip_gen: v7x
topology: tpu7x:2x2x1
jax: 0.10.0
libtpu: 0.0.40
codegen_flags: <defaults>
</compile_context>

<pallas_src>
import functools

import jax
import jax.numpy as jnp
from jax.experimental import pallas as pl
from jax.experimental.pallas import tpu as pltpu


def _round_up(a, b):
    return (a + b - 1) // b * b


# ----------------------------------------------------------------------------
# Weight quantization (mirrors torchao `_quantize`, signed) — setup-time glue.
# ----------------------------------------------------------------------------
def _quantize_weights(weights, group_size, nbit, has_weight_zeros):
    qmin = -(1 << (nbit - 1))
    qmax = (1 << (nbit - 1)) - 1
    n, k = weights.shape
    vals = weights.reshape(-1, group_size)
    vmins = jnp.min(vals, axis=1)
    vmaxs = jnp.max(vals, axis=1)
    # eps guard: constant groups would otherwise give scale=0 -> NaN zeros.
    scales = jnp.maximum((vmaxs - vmins) / (qmax - qmin), 1e-9)
    if has_weight_zeros:
        zeros = qmin - jnp.round(vmins / scales)
    else:
        zeros = jnp.zeros_like(scales)
    qvals = jnp.clip(jnp.round(vals / scales[:, None]) + zeros[:, None], qmin, qmax)
    qvals = qvals.astype(jnp.int8).reshape(n, k)
    scales = scales.reshape(n, k // group_size).astype(jnp.float32)
    zeros = zeros.reshape(n, k // group_size).astype(jnp.float32)
    return qvals, scales, zeros


# ----------------------------------------------------------------------------
# "quantize_and_pack_weights" analogue: quantize + lay out for the kernel so
# no transpose / pad work happens per forward call.
# ----------------------------------------------------------------------------
def quantize_and_pack_weights(weights, nbit, group_size, has_weight_zeros,
                              tile_n=256):
    n, k = weights.shape
    assert k % group_size == 0
    wq, ws, wz = _quantize_weights(weights, group_size, nbit, has_weight_zeros)

    wq_t = wq.T                         # (k, n) int8   — kernel computes x @ W^T
    ws_t = ws.T                         # (k // g, n) f32 group scales
    wb_t = (-wz * ws).T                 # (k // g, n) f32 fused dequant bias

    tn = min(tile_n, _round_up(n, 128))
    n_pad = _round_up(n, tn)
    if n_pad != n:
        pad = n_pad - n
        wq_t = jnp.pad(wq_t, ((0, 0), (0, pad)))
        ws_t = jnp.pad(ws_t, ((0, 0), (0, pad)))
        wb_t = jnp.pad(wb_t, ((0, 0), (0, pad)))

    return dict(wq_t=wq_t, ws_t=ws_t, wb_t=wb_t,
                n=n, k=k, group_size=group_size, tile_n=tn,
                # kept only for building the pure-JAX reference in tests:
                _ws=ws, _wz=wz, _wq=wq)


# ----------------------------------------------------------------------------
# Pallas kernel: dynamic int8 activation quant (once per M tile) + weight
# dequant (per N tile, fused mul-add) + bf16 MXU matmul with f32 accumulation.
# ----------------------------------------------------------------------------
def _dyn_act_intx_linear_kernel(x_ref, wq_ref, ws_ref, wb_ref, out_ref, xq_ref,
                                *, group_size):
    a_qmin, a_qmax = -128.0, 127.0
    eps = 1e-9

    # ---- dynamic per-row (per-token) signed int8 asymmetric quantization ----
    # Only on the first N tile of each M tile; the quant->dequant result (bf16)
    # lives in VMEM scratch and is reused for all N tiles of this M tile.
    @pl.when(pl.program_id(1) == 0)
    def _():
        x = x_ref[...]                                        # (TM, K) f32
        vmin = jnp.min(x, axis=1, keepdims=True)
        vmax = jnp.max(x, axis=1, keepdims=True)
        a_scale = jnp.maximum((vmax - vmin) / (a_qmax - a_qmin), eps)
        a_zero = a_qmin - jnp.round(vmin / a_scale)
        a_q = jnp.clip(jnp.round(x / a_scale) + a_zero, a_qmin, a_qmax)
        xq_ref[...] = ((a_q - a_zero) * a_scale).astype(jnp.bfloat16)

    # ---- dequantize the intx weight tile (group-wise along k) to bf16 ----
    # W_dq = Wq * scale + bias, bias = -zero * scale (precomputed at pack time)
    wq = wq_ref[...].astype(jnp.float32)                      # (K, TN)
    kk, tn = wq.shape
    ng = kk // group_size
    wq3 = wq.reshape(ng, group_size, tn)                      # split sublane dim
    w_dq = (wq3 * ws_ref[...][:, None, :] + wb_ref[...][:, None, :])
    w_dq = w_dq.reshape(kk, tn).astype(jnp.bfloat16)

    # ---- bf16 matmul on the MXU, f32 accumulation ----
    out_ref[...] = jnp.dot(xq_ref[...], w_dq,
                           preferred_element_type=jnp.float32)


# ----------------------------------------------------------------------------
# Forward wrapper (handles 2-D and >= 3-D inputs like the PyTorch module).
# ----------------------------------------------------------------------------
def int8_dyn_act_intx_weight_linear(x, packed, tile_m=256):
    assert x.ndim >= 2
    *lead, m, k = x.shape
    assert k == packed["k"]
    n = packed["n"]
    group_size = packed["group_size"]
    ng = k // group_size
    tn = packed["tile_n"]
    n_pad = packed["wq_t"].shape[1]

    x2 = x.reshape(-1, k).astype(jnp.float32)
    big_m = x2.shape[0]

    tm = min(tile_m, _round_up(big_m, 8))        # sublane-aligned M tile
    mp = _round_up(big_m, tm)
    if mp != big_m:
        x2 = jnp.pad(x2, ((0, mp - big_m), (0, 0)))

    grid = (mp // tm, n_pad // tn)

    out = pl.pallas_call(
        functools.partial(_dyn_act_intx_linear_kernel, group_size=group_size),
        out_shape=jax.ShapeDtypeStruct((mp, n_pad), jnp.float32),
        grid_spec=pltpu.PrefetchScalarGridSpec(
            num_scalar_prefetch=0,
            grid=grid,
            in_specs=[
                pl.BlockSpec((tm, k), lambda i, j: (i, 0)),   # activations tile
                pl.BlockSpec((k, tn), lambda i, j: (0, j)),   # W^T tile (int8)
                pl.BlockSpec((ng, tn), lambda i, j: (0, j)),  # weight scales
                pl.BlockSpec((ng, tn), lambda i, j: (0, j)),  # weight dequant bias
            ],
            out_specs=pl.BlockSpec((tm, tn), lambda i, j: (i, j)),
            scratch_shapes=[pltpu.VMEM((tm, k), jnp.bfloat16)],  # quantized acts
        ),
        compiler_params=pltpu.CompilerParams(
            # N axis is 'arbitrary': the activation-quant scratch is carried
            # across it (computed at j == 0, reused for j > 0). M axis is
            # 'parallel' (megacore-shardable; each core restarts at j == 0).
            dimension_semantics=("parallel", "arbitrary"),
            vmem_limit_bytes=64 * 1024 * 1024,
        ),
    )(x2, packed["wq_t"], packed["ws_t"], packed["wb_t"])

    out = out[:big_m, :n]
    return out.reshape(*lead, m, n)


# ----------------------------------------------------------------------------
def _reference(x, packed):
    """Pure-JAX reference with identical semantics (bf16 MXU operands too)."""
    n, k = packed["n"], packed["k"]
    g = packed["group_size"]
    wq, ws, wz = packed["_wq"], packed["_ws"], packed["_wz"]
    w_dq = ((wq.astype(jnp.float32).reshape(n, k // g, g) - wz[:, :, None])
            * ws[:, :, None]).reshape(n, k).astype(jnp.bfloat16)
    lead = x.shape[:-2]
    x2 = x.reshape(-1, k).astype(jnp.float32)
    vmin = x2.min(axis=1, keepdims=True)
    vmax = x2.max(axis=1, keepdims=True)
    s = jnp.maximum((vmax - vmin) / 255.0, 1e-9)
    z = -128.0 - jnp.round(vmin / s)
    xq = jnp.clip(jnp.round(x2 / s) + z, -128.0, 127.0)
    x_dq = ((xq - z) * s).astype(jnp.bfloat16)
    ref = jnp.dot(x_dq, w_dq.T, preferred_element_type=jnp.float32)
    return ref.reshape(*lead, x.shape[-2], n)


if __name__ == "__main__":
    key = jax.random.PRNGKey(0)
    batch, m, k, n = 2, 8, 64, 256
    group_size, nbit, has_weight_zeros = 32, 4, True

    kx, kw = jax.random.split(key)
    x = jax.random.normal(kx, (batch, m, k), dtype=jnp.float32)
    weights = jax.random.normal(kw, (n, k), dtype=jnp.float32)

    packed = quantize_and_pack_weights(weights, nbit, group_size,
                                       has_weight_zeros)

    # 3-D forward path
    out3 = int8_dyn_act_intx_weight_linear(x, packed, group_size)
    out3 = jax.block_until_ready(out3)
    ref3 = _reference(x, packed)
    assert out3.shape == (batch, m, n)
    assert jnp.allclose(out3, ref3, atol=5e-2, rtol=5e-2), "3D mismatch vs reference"

    # 2-D forward path
    x2d = x[0]
    out2 = int8_dyn_act_intx_weight_linear(x2d, packed)
    out2 = jax.block_until_ready(out2)
    ref2 = _reference(x2d, packed)
    assert out2.shape == (m, n)
    assert jnp.allclose(out2, ref2, atol=5e-2, rtol=5e-2), "2D mismatch vs reference"

    print("KERNEL_OK")
</pallas_src>

<mosaic_0001>
module attributes {stable_mosaic.version = 11 : i64} {
  func.func @_dyn_act_intx_linear_kernel(%arg0: i32, %arg1: i32, %arg2: memref<16x64xf32, #tpu.memory_space<vmem>>, %arg3: memref<64x256xi8, #tpu.memory_space<vmem>>, %arg4: memref<2x256xf32, #tpu.memory_space<vmem>>, %arg5: memref<2x256xf32, #tpu.memory_space<vmem>>, %arg6: memref<16x256xf32, #tpu.memory_space<vmem>>, %arg7: memref<16x64xbf16, #tpu.memory_space<vmem>>) attributes {dimension_semantics = [#tpu.dimension_semantics<parallel>, #tpu.dimension_semantics<arbitrary>], iteration_bounds = array<i64: 1, 1>, scalar_prefetch = 0 : i64, scratch_operands = 1 : i64, tpu.core_type = #tpu.core_type<tc>, window_params = [{transform_indices = @transform_0, window_bounds = array<i64: 16, 64>}, {transform_indices = @transform_1, window_bounds = array<i64: 64, 256>}, {transform_indices = @transform_2, window_bounds = array<i64: 2, 256>}, {transform_indices = @transform_3, window_bounds = array<i64: 2, 256>}, {transform_indices = @transform_4, window_bounds = array<i64: 16, 256>}]} {
    %c0_i32 = arith.constant 0 : i32
    %0 = arith.cmpi eq, %arg1, %c0_i32 : i32
    %1 = arith.extui %0 : i1 to i32
    %c0_i32_0 = arith.constant 0 : i32
    %2 = arith.cmpi ne, %1, %c0_i32_0 : i32
    scf.if %2 {
      %c0_10 = arith.constant 0 : index
      %c0_11 = arith.constant 0 : index
      %19 = vector.load %arg2[%c0_10, %c0_11] : memref<16x64xf32, #tpu.memory_space<vmem>>, vector<16x64xf32>
      %cst_12 = arith.constant dense<0x7F800000> : vector<16xf32>
      %20 = vector.multi_reduction <minimumf>, %19, %cst_12 [1] : vector<16x64xf32> to vector<16xf32>
      %21 = vector.shape_cast %20 : vector<16xf32> to vector<16x1xf32>
      %cst_13 = arith.constant dense<0xFF800000> : vector<16xf32>
      %22 = vector.multi_reduction <maximumf>, %19, %cst_13 [1] : vector<16x64xf32> to vector<16xf32>
      %23 = vector.shape_cast %22 : vector<16xf32> to vector<16x1xf32>
      %24 = arith.subf %23, %21 : vector<16x1xf32>
      %cst_14 = arith.constant 2.550000e+02 : f32
      %25 = vector.broadcast %cst_14 : f32 to vector<16x1xf32>
      %26 = arith.divf %24, %25 : vector<16x1xf32>
      %cst_15 = arith.constant 9.99999971E-10 : f32
      %27 = vector.broadcast %cst_15 : f32 to vector<16x1xf32>
      %28 = arith.maximumf %26, %27 : vector<16x1xf32>
      %29 = arith.divf %21, %28 : vector<16x1xf32>
      %30 = math.roundeven %29 : vector<16x1xf32>
      %cst_16 = arith.constant -1.280000e+02 : f32
      %31 = vector.broadcast %cst_16 : f32 to vector<16x1xf32>
      %32 = arith.subf %31, %30 : vector<16x1xf32>
      %33 = vector.broadcast %28 : vector<16x1xf32> to vector<16x64xf32>
      %34 = arith.divf %19, %33 : vector<16x64xf32>
      %35 = math.roundeven %34 : vector<16x64xf32>
      %36 = vector.broadcast %32 : vector<16x1xf32> to vector<16x64xf32>
      %37 = arith.addf %35, %36 : vector<16x64xf32>
      %cst_17 = arith.constant -1.280000e+02 : f32
      %cst_18 = arith.constant 1.270000e+02 : f32
      %38 = vector.broadcast %cst_17 : f32 to vector<16x64xf32>
      %39 = arith.maximumf %38, %37 : vector<16x64xf32>
      %40 = vector.broadcast %cst_18 : f32 to vector<16x64xf32>
      %41 = arith.minimumf %40, %39 : vector<16x64xf32>
      %42 = vector.broadcast %32 : vector<16x1xf32> to vector<16x64xf32>
      %43 = arith.subf %41, %42 : vector<16x64xf32>
      %44 = vector.broadcast %28 : vector<16x1xf32> to vector<16x64xf32>
      %45 = arith.mulf %43, %44 : vector<16x64xf32>
      %46 = arith.truncf %45 : vector<16x64xf32> to vector<16x64xbf16>
      %c0_19 = arith.constant 0 : index
      %c0_20 = arith.constant 0 : index
      %47 = vector.load %arg7[%c0_19, %c0_20] : memref<16x64xbf16, #tpu.memory_space<vmem>>, vector<16x64xbf16>
      tpu.vector_store %arg7[%c0_19, %c0_20], %46 {strides = array<i32>} : memref<16x64xbf16, #tpu.memory_space<vmem>>, vector<16x64xbf16>,
    } else {
    }
    %c0 = arith.constant 0 : index
    %c0_1 = arith.constant 0 : index
    %3 = vector.load %arg3[%c0, %c0_1] : memref<64x256xi8, #tpu.memory_space<vmem>>, vector<64x256xi8>
    %4 = arith.sitofp %3 : vector<64x256xi8> to vector<64x256xf32>
    %5 = vector.shape_cast %4 : vector<64x256xf32> to vector<2x32x256xf32>
    %c0_2 = arith.constant 0 : index
    %c0_3 = arith.constant 0 : index
    %6 = vector.load %arg4[%c0_2, %c0_3] : memref<2x256xf32, #tpu.memory_space<vmem>>, vector<2x256xf32>
    %7 = vector.shape_cast %6 : vector<2x256xf32> to vector<2x1x256xf32>
    %8 = vector.broadcast %7 : vector<2x1x256xf32> to vector<2x32x256xf32>
    %9 = arith.mulf %5, %8 : vector<2x32x256xf32>
    %c0_4 = arith.constant 0 : index
    %c0_5 = arith.constant 0 : index
    %10 = vector.load %arg5[%c0_4, %c0_5] : memref<2x256xf32, #tpu.memory_space<vmem>>, vector<2x256xf32>
    %11 = vector.shape_cast %10 : vector<2x256xf32> to vector<2x1x256xf32>
    %12 = vector.broadcast %11 : vector<2x1x256xf32> to vector<2x32x256xf32>
    %13 = arith.addf %9, %12 : vector<2x32x256xf32>
    %14 = vector.shape_cast %13 : vector<2x32x256xf32> to vector<64x256xf32>
    %15 = arith.truncf %14 : vector<64x256xf32> to vector<64x256xbf16>
    %c0_6 = arith.constant 0 : index
    %c0_7 = arith.constant 0 : index
    %16 = vector.load %arg7[%c0_6, %c0_7] : memref<16x64xbf16, #tpu.memory_space<vmem>>, vector<16x64xbf16>
    %cst = arith.constant dense<0.000000e+00> : vector<16x256xf32>
    %17 = tpu.matmul %16, %15, %cst {dimension_numbers = #tpu.dot_dimension_numbers<[1], [0], [0], [1], [0, 0, 1, 1], [], []>} : vector<16x64xbf16>, vector<64x256xbf16>, vector<16x256xf32> -> vector<16x256xf32>
    %c0_8 = arith.constant 0 : index
    %c0_9 = arith.constant 0 : index
    %18 = vector.load %arg6[%c0_8, %c0_9] : memref<16x256xf32, #tpu.memory_space<vmem>>, vector<16x256xf32>
    tpu.vector_store %arg6[%c0_8, %c0_9], %17 {strides = array<i32>} : memref<16x256xf32, #tpu.memory_space<vmem>>, vector<16x256xf32>,
    return
  }
  func.func @transform_0(%arg0: i32, %arg1: i32) -> (i32, i32) {
    %c0_i32 = arith.constant 0 : i32
    %c0_i32_0 = arith.constant 0 : i32
    return %arg0, %c0_i32 : i32, i32
  }
  func.func @transform_1(%arg0: i32, %arg1: i32) -> (i32, i32) {
    %c0_i32 = arith.constant 0 : i32
    %c0_i32_0 = arith.constant 0 : i32
    return %c0_i32, %arg1 : i32, i32
  }
  func.func @transform_2(%arg0: i32, %arg1: i32) -> (i32, i32) {
    %c0_i32 = arith.constant 0 : i32
    %c0_i32_0 = arith.constant 0 : i32
    return %c0_i32, %arg1 : i32, i32
  }
  func.func @transform_3(%arg0: i32, %arg1: i32) -> (i32, i32) {
    %c0_i32 = arith.constant 0 : i32
    %c0_i32_0 = arith.constant 0 : i32
    return %c0_i32, %arg1 : i32, i32
  }
  func.func @transform_4(%arg0: i32, %arg1: i32) -> (i32, i32) {
    %c0_i32 = arith.constant 0 : i32
    return %arg0, %arg1 : i32, i32
  }
}

</mosaic_0001>

<llo_original>
// kernel: tpu_custom_call.1
$region0: #{tpu_custom_call.1}
  #allocation0 [shape = 'u32[]', space=smem, size = 0x4, offset = 0x4, fixed_abs, tag = 'smem constant byte address 0x4 - core index']
  #allocation1 [shape = 'u32[144,128]{1,0:T(1,128)}', space=vmem, size = 0x12000, scoped, tag = 'internal scratch']
  #allocation2 [shape = 'bf16[16,64]{1,0:T(16,128)(2,1)}', space=vmem, size = 0x1000, scoped, tag = 'scratch operand']
  %s0 = inlined_call_operand.hbm [shape: f32[16,64], index: 0, kind: input, shape index: {}]
  %s1 = inlined_call_operand.hbm [shape: s8[64,256], index: 1, kind: input, shape index: {}]
  %s2 = inlined_call_operand.hbm [shape: f32[2,256], index: 2, kind: input, shape index: {}]
  %s3 = inlined_call_operand.hbm [shape: f32[2,256], index: 3, kind: input, shape index: {}]
  %s4 = inlined_call_operand.hbm [shape: f32[16,256], index: 4, kind: output, shape index: {}]
  %s5 = sld [smem:[#allocation0]]
  $region46: #{tpu_custom_call.1} parent=0
    _
  %s7 = ssub.s32 1, %s5
  %s8 = scalar_select 0, %s7, %s5
  $region1: #{tpu_custom_call.1} parent=0
    #allocation3 [shape = 'u8[8192]{0}', space=vmem, size = 0x2000, scoped, tag = 'input window, operand 0, single buffered']
    #allocation4 [shape = 's32[1]{0}', space=sflag, size = 0x4, scoped, tag = 'scoped memory for tpu_custom_call.1']
    #allocation5 [shape = 's32[1]{0}', space=sflag, size = 0x4, scoped, tag = 'scoped memory for tpu_custom_call.1']
    #allocation6 [shape = 'u8[16384]{0}', space=vmem, size = 0x4000, scoped, tag = 'input window, operand 1, single buffered']
    #allocation7 [shape = 's32[1]{0}', space=sflag, size = 0x4, scoped, tag = 'scoped memory for tpu_custom_call.1']
    #allocation8 [shape = 'u8[2048]{0}', space=vmem, size = 0x800, scoped, tag = 'input window, operand 2, single buffered']
    #allocation9 [shape = 'u8[2048]{0}', space=vmem, size = 0x800, scoped, tag = 'input window, operand 3, single buffered']
    #allocation10 [shape = 's32[1]{0}', space=sflag, size = 0x4, scoped, tag = 'scoped memory for tpu_custom_call.1']
    #allocation11 [shape = 'u8[16384]{0}', space=vmem, size = 0x4000, scoped, tag = 'output window, operand 0, single buffered']
    %9 = vsyncpa [#allocation4], 0
    %10 = vsyncpa [#allocation7], 0
    %11 = vsyncpa [#allocation10], 0
    %12 = vsyncpa [#allocation5], 0
    // Predicated region
    $region2: #{tpu_custom_call.1} parent=1 // pred_check
      _
    $region3: #{tpu_custom_call.1} parent=1 // pred_check_branch
      %14 = sbr.rel (0) target = $region5
    $region4: #{tpu_custom_call.1} parent=1 // pred_region
      %s16 = ssub.s32 256, 256
      %17 = vsyncadd [#allocation4], %s16
      %s18 = sshll.u32 [#allocation3], 4
      %s19 = int_to_ptr.vmem [resolvable:$true] %s18
      %24 = dma.hbm_to_vmem [thread:$0]  %s0, 256, %s19, [#allocation4], 128, 128, 8
    $region5: #{tpu_custom_call.1} parent=1 // pred_fallthru
      _
    // Predicated region
    $region6: #{tpu_custom_call.1} parent=1 // pred_check
      _
    $region7: #{tpu_custom_call.1} parent=1 // pred_check_branch
      %26 = sbr.rel (0) target = $region9
    $region8: #{tpu_custom_call.1} parent=1 // pred_region
      %s28 = ssub.s32 512, 512
      %29 = vsyncadd [#allocation7], %s28
      %s30 = sshll.u32 [#allocation6], 4
      %s31 = int_to_ptr.vmem [resolvable:$true] %s30
      %36 = dma.hbm_to_vmem [thread:$0]  %s1, 512, %s31, [#allocation7], 256, 256, 16
    $region9: #{tpu_custom_call.1} parent=1 // pred_fallthru
      _
    // Predicated region
    $region10: #{tpu_custom_call.1} parent=1 // pred_check
      _
    $region11: #{tpu_custom_call.1} parent=1 // pred_check_branch
      %38 = sbr.rel (0) target = $region13
    $region12: #{tpu_custom_call.1} parent=1 // pred_region
      %s40 = ssub.s32 64, 64
      %41 = vsyncadd [#allocation7], %s40
      %s43 = sshll.u32 [#allocation8], 4
      %s44 = int_to_ptr.vmem [resolvable:$true] %s43
      %46 = dma.hbm_to_vmem [thread:$0]  %s2, 64, %s44, [#allocation7]
    $region13: #{tpu_custom_call.1} parent=1 // pred_fallthru
      _
    // Predicated region
    $region14: #{tpu_custom_call.1} parent=1 // pred_check
      _
    $region15: #{tpu_custom_call.1} parent=1 // pred_check_branch
      %48 = sbr.rel (0) target = $region17
    $region16: #{tpu_custom_call.1} parent=1 // pred_region
      %s50 = ssub.s32 64, 64
      %51 = vsyncadd [#allocation10], %s50
      %s53 = sshll.u32 [#allocation9], 4
      %s54 = int_to_ptr.vmem [resolvable:$true] %s53
      %56 = dma.hbm_to_vmem [thread:$0]  %s3, 64, %s54, [#allocation10]
    $region17: #{tpu_custom_call.1} parent=1 // pred_fallthru
      _
    // Predicated region
    $region18: #{tpu_custom_call.1} parent=1 // pred_check
      _
    $region19: #{tpu_custom_call.1} parent=1 // pred_check_branch
      %58 = sbr.rel (0) target = $region21
    $region20: #{tpu_custom_call.1} parent=1 // pred_region
      %59 = dma.done [#allocation4], 256
    $region21: #{tpu_custom_call.1} parent=1 // pred_fallthru
      _
    // Predicated region
    $region22: #{tpu_custom_call.1} parent=1 // pred_check
      _
    $region23: #{tpu_custom_call.1} parent=1 // pred_check_branch
      %61 = sbr.rel (0) target = $region25
    $region24: #{tpu_custom_call.1} parent=1 // pred_region
      %62 = dma.done [#allocation7], 512
    $region25: #{tpu_custom_call.1} parent=1 // pred_fallthru
      _
    // Predicated region
    $region26: #{tpu_custom_call.1} parent=1 // pred_check
      _
    $region27: #{tpu_custom_call.1} parent=1 // pred_check_branch
      %64 = sbr.rel (0) target = $region29
    $region28: #{tpu_custom_call.1} parent=1 // pred_region
      %65 = dma.done [#allocation7], 64
    $region29: #{tpu_custom_call.1} parent=1 // pred_fallthru
      _
    // Predicated region
    $region30: #{tpu_custom_call.1} parent=1 // pred_check
      _
    $region31: #{tpu_custom_call.1} parent=1 // pred_check_branch
      %67 = sbr.rel (0) target = $region33
    $region32: #{tpu_custom_call.1} parent=1 // pred_region
      %68 = dma.done [#allocation10], 64
    $region33: #{tpu_custom_call.1} parent=1 // pred_fallthru
      _
    %p70 = scmp.eq.s32.totalorder 0, 0
    // Predicated region
    $region34: #{tpu_custom_call.1} parent=1 // pred_check
      %p71 = pneg %p70
    $region35: #{tpu_custom_call.1} parent=1 // pred_check_branch
      %73 = sbr.rel (%p71) target = $region37
    $region36: #{tpu_custom_call.1} parent=1 // pred_region
      %v74 = vld [vmem:[#allocation3] sm:$0xff]
      %v75 = vld [vmem:[#allocation3 + $0x8] sm:$0xff]
      %vm76 = vcmask 523264
      %v77 = vsel %vm76, %v74, inf
      %78 = vmin.xlane.f32.xlu0 %v77
      %v79 = vpop.xlane.xlu0 %78
      %v80 = vsel %vm76, %v75, inf
      %81 = vmin.xlane.f32.xlu0 %v80
      %v82 = vpop.xlane.xlu0 %81
      %v83 = vsel %vm76, %v74, -inf
      %84 = vmax.xlane.f32.xlu0 %v83
      %v85 = vpop.xlane.xlu0 %84
      %v86 = vsel %vm76, %v75, -inf
      %87 = vmax.xlane.f32.xlu0 %v86
      %v88 = vpop.xlane.xlu0 %87
      %v89 = vsub.f32 %v85, %v79
      %v90 = vsub.f32 %v88, %v82
      %v91 = vrcp.pop 255.0
      %v92 = vmul.f32 %v89, %v91
      %v93 = vmul.f32 %v90, %v91
      %v94 = vmax.f32 %v92, 1e-09
      %v95 = vmax.f32 %v93, 1e-09
      %v96 = vrcp.pop %v94
      %v97 = vmul.f32 %v79, %v96
      %v98 = vrcp.pop %v95
      %v99 = vmul.f32 %v82, %v98
      %v100 = vround.ne.pseudo %v97
      %v101 = vround.ne.pseudo %v99
      %v102 = vsub.f32 -128.0, %v100
      %v103 = vsub.f32 -128.0, %v101
      %v104 = vmul.f32 %v74, %v96
      %v105 = vmul.f32 %v75, %v98
      %v106 = vround.ne.pseudo %v104
      %v107 = vround.ne.pseudo %v105
      %v108 = vadd.f32 %v106, %v102
      %v109 = vadd.f32 %v107, %v103
      %v110 = vmax.f32 %v108, -128.0
      %v111 = vmax.f32 %v109, -128.0
      %v112 = vmin.f32 %v110, 127.0
      %v113 = vmin.f32 %v111, 127.0
      %v114 = vsub.f32 %v112, %v102
      %v115 = vsub.f32 %v113, %v103
      %v116 = vmul.f32 %v114, %v94
      %v117 = vmul.f32 %v115, %v95
      %v118 = vpack.c.bf16 %v117, %v116
      %119 = vst.msk [vmem:[#allocation2] sm:$0xff] %vm76, %v118
    $region37: #{tpu_custom_call.1} parent=1 // pred_fallthru
      _
    %v120 = vld [vmem:[#allocation6] sm:$0xff]
    %v121 = vld [vmem:[#allocation6 + $0x8] sm:$0xff]
    %v122 = vld [vmem:[#allocation6 + $0x10] sm:$0xff]
    %v123 = vld [vmem:[#allocation6 + $0x18] sm:$0xff]
    %v124 = vunpack.c.0.s8 %v120
    %v125 = vunpack.c.0.s8 %v121
    %v126 = vunpack.c.1.s8 %v120
    %v127 = vunpack.c.1.s8 %v121
    %v128 = vunpack.c.2.s8 %v120
    %v129 = vunpack.c.2.s8 %v121
    %v130 = vunpack.c.3.s8 %v120
    %v131 = vunpack.c.3.s8 %v121
    %v132 = vunpack.c.0.s8 %v122
    %v133 = vunpack.c.0.s8 %v123
    %v134 = vunpack.c.1.s8 %v122
    %v135 = vunpack.c.1.s8 %v123
    %v136 = vunpack.c.2.s8 %v122
    %v137 = vunpack.c.2.s8 %v123
    %v138 = vunpack.c.3.s8 %v122
    %v139 = vunpack.c.3.s8 %v123
    %v140 = vcvt.s32.f32 %v124
    %v141 = vcvt.s32.f32 %v125
    %v142 = vcvt.s32.f32 %v126
    %v143 = vcvt.s32.f32 %v127
    %v144 = vcvt.s32.f32 %v128
    %v145 = vcvt.s32.f32 %v129
    %v146 = vcvt.s32.f32 %v130
    %v147 = vcvt.s32.f32 %v131
    %v148 = vcvt.s32.f32 %v132
    %v149 = vcvt.s32.f32 %v133
    %v150 = vcvt.s32.f32 %v134
    %v151 = vcvt.s32.f32 %v135
    %v152 = vcvt.s32.f32 %v136
    %v153 = vcvt.s32.f32 %v137
    %v154 = vcvt.s32.f32 %v138
    %v155 = vcvt.s32.f32 %v139
    %v156 = vld [vmem:[#allocation8] sm:$0xf]
    %v159 = vunpack.c.l.s4 1966171168
    %v160 = vunpack.c.0.s8 %v159
    %v161 = vlaneseq
    %v162 = vshrl.u32 %v161, 7
    %v163 = vsub.s32 %v160, %v162
    %v164 = vrot.slane %v156, %v163
    %v165 = vcombine.high %v164, %v164
    %v166 = vlaneseq
    %v167 = vshrl.u32 %v166, 7
    %v168 = vsub.s32 0, %v167
    %v169 = vrot.slane %v164, %v168
    %v170 = vlaneseq
    %v171 = vshrl.u32 %v170, 7
    %v172 = vsub.s32 1, %v171
    %v173 = vrot.slane %v164, %v172
    %v174 = vlaneseq
    %v175 = vshrl.u32 %v174, 7
    %v176 = vsub.s32 0, %v175
    %v177 = vrot.slane %v165, %v176
    %v178 = vlaneseq
    %v179 = vshrl.u32 %v178, 7
    %v180 = vsub.s32 1, %v179
    %v181 = vrot.slane %v165, %v180
    %v186 = vmul.f32 %v140, %v169
    %v187 = vmul.f32 %v141, %v173
    %v188 = vmul.f32 %v142, %v169
    %v189 = vmul.f32 %v143, %v173
    %v190 = vmul.f32 %v144, %v169
    %v191 = vmul.f32 %v145, %v173
    %v192 = vmul.f32 %v146, %v169
    %v193 = vmul.f32 %v147, %v173
    %v194 = vmul.f32 %v148, %v177
    %v195 = vmul.f32 %v149, %v181
    %v196 = vmul.f32 %v150, %v177
    %v197 = vmul.f32 %v151, %v181
    %v198 = vmul.f32 %v152, %v177
    %v199 = vmul.f32 %v153, %v181
    %v200 = vmul.f32 %v154, %v177
    %v201 = vmul.f32 %v155, %v181
    %v202 = vld [vmem:[#allocation9] sm:$0xf]
    %v205 = vunpack.c.l.s4 1966171168
    %v206 = vunpack.c.0.s8 %v205
    %v207 = vlaneseq
    %v208 = vshrl.u32 %v207, 7
    %v209 = vsub.s32 %v206, %v208
    %v210 = vrot.slane %v202, %v209
    %v211 = vcombine.high %v210, %v210
    %v212 = vlaneseq
    %v213 = vshrl.u32 %v212, 7
    %v214 = vsub.s32 0, %v213
    %v215 = vrot.slane %v210, %v214
    %v216 = vlaneseq
    %v217 = vshrl.u32 %v216, 7
    %v218 = vsub.s32 1, %v217
    %v219 = vrot.slane %v210, %v218
    %v220 = vlaneseq
    %v221 = vshrl.u32 %v220, 7
    %v222 = vsub.s32 0, %v221
    %v223 = vrot.slane %v211, %v222
    %v224 = vlaneseq
    %v225 = vshrl.u32 %v224, 7
    %v226 = vsub.s32 1, %v225
    %v227 = vrot.slane %v211, %v226
    %v232 = vadd.f32 %v186, %v215
    %v233 = vadd.f32 %v187, %v219
    %v234 = vadd.f32 %v188, %v215
    %v235 = vadd.f32 %v189, %v219
    %v236 = vadd.f32 %v190, %v215
    %v237 = vadd.f32 %v191, %v219
    %v238 = vadd.f32 %v192, %v215
    %v239 = vadd.f32 %v193, %v219
    %v240 = vadd.f32 %v194, %v223
    %v241 = vadd.f32 %v195, %v227
    %v242 = vadd.f32 %v196, %v223
    %v243 = vadd.f32 %v197, %v227
    %v244 = vadd.f32 %v198, %v223
    %v245 = vadd.f32 %v199, %v227
    %v246 = vadd.f32 %v200, %v223
    %v247 = vadd.f32 %v201, %v227
    %v248 = vpack.c.bf16 %v234, %v232
    %v249 = vpack.c.bf16 %v235, %v233
    %v250 = vpack.c.bf16 %v238, %v236
    %v251 = vpack.c.bf16 %v239, %v237
    %v252 = vpack.c.bf16 %v242, %v240
    %v253 = vpack.c.bf16 %v243, %v241
    %v254 = vpack.c.bf16 %v246, %v244
    %v255 = vpack.c.bf16 %v247, %v245
    %v256 = vld [vmem:[#allocation2] sm:$0xff]
    %vm257 = vcmask 523264
    %v259 = vsel %vm257, %v256, 0
    %261 = vmatprep.subr.bf16.mxu0 %v249
    %262 = vmatpush1.bf16.msra.mxu0 %v248
    %263 = vmatprep.subr.bf16.mxu0 %v251
    %264 = vmatpush1.bf16.msra.mxu0 %v250
    %265 = vmatprep.subr.bf16.mxu0 %v253
    %266 = vmatpush1.bf16.msra.mxu0 %v252
    %267 = vmatprep.subr.bf16.mxu0 %v255
    %268 = vmatpush1.bf16.msra.mxu0 %v254
    %269 = vmatprep.subr.bf16.mxu0 0
    %270 = vmatpush1.bf16.msra.mxu0 0
    %271 = vmatprep.subr.bf16.mxu0 0
    %272 = vmatpush1.bf16.msra.mxu0 0
    %273 = vmatprep.subr.bf16.mxu0 0
    %274 = vmatpush1.bf16.msra.mxu0 0
    %275 = vmatprep.subr.bf16.mxu0 0
    %276 = vmatpush1.bf16.msra.mxu0 0
    %277 = vmatprep.subr.bf16.mxu0 0
    %278 = vmatpush1.bf16.msra.mxu0 0
    %279 = vmatprep.subr.bf16.mxu0 0
    %280 = vmatpush1.bf16.msra.mxu0 0
    %281 = vmatprep.subr.bf16.mxu0 0
    %282 = vmatpush1.bf16.msra.mxu0 0
    %283 = vmatprep.subr.bf16.mxu0 0
    %284 = vmatpush1.bf16.msra.mxu0 0
    %285 = vmatprep.subr.bf16.mxu0 0
    %286 = vmatpush1.bf16.msra.mxu0 0
    %287 = vmatprep.subr.bf16.mxu0 0
    %288 = vmatpush1.bf16.msra.mxu0 0
    %289 = vmatprep.subr.bf16.mxu0 0
    %290 = vmatpush1.bf16.msra.mxu0 0
    %291 = vmatprep.subr.bf16.mxu0 0
    %292 = vmatpush1.bf16.msra.mxu0 0
    %293 = vmatprep.mubr.bf16.mxu0 0
    %294 = vmatmul.mubr.bf16.gmra.mrb[0].mxu0 %v259
    %v295 = vpop.f32.mrb[0].mxu0
    %v296 = vadd.f32 0.0, %v295
    %v297 = vpop.f32.mrb[0].mxu0
    %v298 = vadd.f32 0.0, %v297
    %v299 = vpop.f32.mrb[0].mxu0
    %v300 = vadd.f32 0.0, %v299
    %v301 = vpop.f32.mrb[0].mxu0
    %v302 = vadd.f32 0.0, %v301
    %303 = vdwg.mxu0
    %304 = vst [vmem:[#allocation11] sm:$0xff] %v296
    %305 = vst [vmem:[#allocation11 + $0x8] sm:$0xff] %v298
    %306 = vst [vmem:[#allocation11 + $0x10] sm:$0xff] %v300
    %307 = vst [vmem:[#allocation11 + $0x18] sm:$0xff] %v302
    // Predicated region
    $region38: #{tpu_custom_call.1} parent=1 // pred_check
      _
    $region39: #{tpu_custom_call.1} parent=1 // pred_check_branch
      %309 = sbr.rel (0) target = $region41
    $region40: #{tpu_custom_call.1} parent=1 // pred_region
      %s311 = ssub.s32 512, 512
      %312 = vsyncadd [#allocation5], %s311
      %s313 = sshll.u32 [#allocation11], 4
      %s314 = int_to_ptr.vmem [resolvable:$true] %s313
      %319 = dma.vmem_to_hbm [thread:$0]  %s314, 512, %s4, [#allocation5], 256, 256, 16
    $region41: #{tpu_custom_call.1} parent=1 // pred_fallthru
      _
    // Predicated region
    $region42: #{tpu_custom_call.1} parent=1 // pred_check
      _
    $region43: #{tpu_custom_call.1} parent=1 // pred_check_branch
      %321 = sbr.rel (0) target = $region45
    $region44: #{tpu_custom_call.1} parent=1 // pred_region
      %322 = dma.done [#allocation5], 512
    $region45: #{tpu_custom_call.1} parent=1 // pred_fallthru
      _
    %323 = vsyncpa [#allocation4], 1
    %324 = vsyncpa [#allocation7], 1
    %325 = vsyncpa [#allocation10], 1
    %326 = vsyncpa [#allocation5], 1

</llo_original>
